<compile_context>
chip_gen: v7x
topology: tpu7x:2x2x1
jax: 0.10.0
libtpu: 0.0.40
codegen_flags: <defaults>
</compile_context>

<pallas_src>
import jax
import jax.numpy as jnp
from jax.experimental import pallas as pl
from jax.experimental.pallas import tpu as pltpu

LANE = 128   # vreg lane width
SUB = 8      # vreg sublane count


def _round_up(x, m):
    return ((x + m - 1) // m) * m


def policy_kernel(x_ref, p1_ref, p2_ref, o_ref):
    # Static layout info recovered from the (static) block shapes.
    n_in_pad = p1_ref.shape[0] - SUB      # rows [0:n_in_pad] = W1, then 8x b1
    hidden_pad = p2_ref.shape[0] - SUB    # rows [0:hidden_pad] = W2, then 8x b2

    # ---- layer 1: h = relu(x @ W1 + b1) ----
    w1 = p1_ref[0:n_in_pad, :]
    b1 = p1_ref[n_in_pad:n_in_pad + 1, :]          # (1, H), broadcasts over batch
    h = jnp.dot(x_ref[...], w1, preferred_element_type=jnp.float32) + b1
    h = jnp.maximum(h, 0.0)

    # ---- layer 2: logits = h @ W2 + b2 (action dim padded to 128 lanes) ----
    w2 = p2_ref[0:hidden_pad, :]
    b2 = p2_ref[hidden_pad:hidden_pad + 1, :]      # (1, A_pad); padded lanes = -1e9
    logits = jnp.dot(h, w2, preferred_element_type=jnp.float32) + b2

    # ---- softmax over actions (stable; padded lanes -> exp == 0) ----
    m = jnp.max(logits, axis=1, keepdims=True)
    e = jnp.exp(logits - m)
    denom = jnp.sum(e, axis=1, keepdims=True)
    o_ref[...] = (e / denom).astype(o_ref.dtype)   # exact division: rows sum to 1


def pack_params(w1, b1, w2, b2):
    """Pack weight+bias into contiguous, tile-aligned slabs (done once).

    p1: (round8(num_inputs) + 8, round8(hidden))   [W1 rows | b1 replicated x8]
    p2: (round8(hidden)    + 8, round128(actions)) [W2 rows | b2 replicated x8]
    Padded action lanes get zero weights and a -1e9 bias so their softmax
    probability is exactly 0.
    """
    num_inputs, hidden = w1.shape
    num_actions = w2.shape[1]
    n_in_pad = _round_up(num_inputs, SUB)
    hidden_pad = _round_up(hidden, SUB)
    a_pad = _round_up(num_actions, LANE)

    w1p = jnp.zeros((n_in_pad, hidden_pad), jnp.float32).at[:num_inputs, :hidden].set(w1)
    b1p = jnp.zeros((hidden_pad,), jnp.float32).at[:hidden].set(b1)
    p1 = jnp.concatenate([w1p, jnp.tile(b1p[None, :], (SUB, 1))], axis=0)

    w2p = jnp.zeros((hidden_pad, a_pad), jnp.float32).at[:hidden, :num_actions].set(w2)
    b2p = jnp.full((a_pad,), -1e9, jnp.float32).at[:num_actions].set(b2)
    p2 = jnp.concatenate([w2p, jnp.tile(b2p[None, :], (SUB, 1))], axis=0)

    return p1, p2, num_actions


def policy_network_forward(state, p1, p2, num_actions, *, block_b=256,
                           slice_output=True):
    """state: [B, num_inputs] f32; returns softmax probs [B, num_actions] f32
    (or the lane-padded [B, A_pad] if slice_output=False)."""
    B = state.shape[0]
    n_in_pad = p1.shape[0] - SUB
    hidden_pad = p2.shape[0] - SUB
    a_pad = p2.shape[1]

    # Batch tile: fill MXU rows once B is large; degenerate single tile when small.
    tb = min(_round_up(B, SUB), block_b)
    b_pad = _round_up(B, tb)

    x = state
    if x.shape[1] != n_in_pad or b_pad != B:
        x = jnp.pad(x, ((0, b_pad - B), (0, n_in_pad - x.shape[1])))

    grid = (b_pad // tb,)
    cost = pl.CostEstimate(
        flops=2 * b_pad * (n_in_pad * hidden_pad + hidden_pad * a_pad),
        transcendentals=b_pad * a_pad,
        bytes_accessed=4 * (x.size + p1.size + p2.size + b_pad * a_pad),
    )

    out = pl.pallas_call(
        policy_kernel,
        out_shape=jax.ShapeDtypeStruct((b_pad, a_pad), jnp.float32),
        grid=grid,
        in_specs=[
            # batch tile marches with the grid
            pl.BlockSpec((tb, n_in_pad), lambda i: (i, 0)),
            # param slabs: constant block index -> DMA'd once, resident across steps
            pl.BlockSpec((n_in_pad + SUB, hidden_pad), lambda i: (0, 0)),
            pl.BlockSpec((hidden_pad + SUB, a_pad), lambda i: (0, 0)),
        ],
        out_specs=pl.BlockSpec((tb, a_pad), lambda i: (i, 0)),
        compiler_params=pltpu.CompilerParams(
            dimension_semantics=("parallel",)),   # v7x: shard batch across 2 TCs
        cost_estimate=cost,
    )(x, p1, p2)

    if slice_output:
        return out[:B, :num_actions]
    return out[:B]


def init_params(key, num_inputs, num_actions, hidden_size=256):
    """Deterministic init mimicking nn.Linear default (U(-1/sqrt(fan_in), +))."""
    k1, k2, k3, k4 = jax.random.split(key, 4)
    bound1 = 1.0 / jnp.sqrt(num_inputs)
    bound2 = 1.0 / jnp.sqrt(hidden_size)
    # stored as [in, out] (transpose of nn.Linear.weight)
    w1 = jax.random.uniform(k1, (num_inputs, hidden_size), jnp.float32, -bound1, bound1)
    b1 = jax.random.uniform(k2, (hidden_size,), jnp.float32, -bound1, bound1)
    w2 = jax.random.uniform(k3, (hidden_size, num_actions), jnp.float32, -bound2, bound2)
    b2 = jax.random.uniform(k4, (num_actions,), jnp.float32, -bound2, bound2)
    return w1, b1, w2, b2


if __name__ == "__main__":
    # Small shapes consistent with the module: batch=8, num_inputs=32,
    # hidden_size=256 (module default), num_actions=8.
    B, NUM_INPUTS, HIDDEN, NUM_ACTIONS = 8, 32, 256, 8

    key = jax.random.PRNGKey(0)
    kx, kp = jax.random.split(key)
    state = jax.random.normal(kx, (B, NUM_INPUTS), jnp.float32)
    w1, b1, w2, b2 = init_params(kp, NUM_INPUTS, NUM_ACTIONS, HIDDEN)

    p1, p2, n_act = pack_params(w1, b1, w2, b2)   # one-time packing / padding

    out = policy_network_forward(state, p1, p2, n_act)
    out = jax.block_until_ready(out)

    # reference check in plain JAX (original, unpadded parameters)
    h_ref = jnp.maximum(state @ w1 + b1, 0.0)
    ref = jax.nn.softmax(h_ref @ w2 + b2, axis=1)

    assert out.shape == (B, NUM_ACTIONS)
    assert jnp.allclose(out, ref, atol=2e-3, rtol=2e-3)
    # exact division -> rows sum to 1 up to fp rounding
    assert jnp.allclose(jnp.sum(out, axis=1), 1.0, atol=1e-5)
    assert bool(jnp.all(out >= 0.0))

    print("KERNEL_OK")
</pallas_src>

<mosaic_0001>
module attributes {stable_mosaic.version = 11 : i64} {
  func.func @policy_kernel(%arg0: i32, %arg1: memref<8x32xf32, #tpu.memory_space<vmem>>, %arg2: memref<40x256xf32, #tpu.memory_space<vmem>>, %arg3: memref<264x128xf32, #tpu.memory_space<vmem>>, %arg4: memref<8x128xf32, #tpu.memory_space<vmem>>) attributes {dimension_semantics = [#tpu.dimension_semantics<parallel>], iteration_bounds = array<i64: 1>, scalar_prefetch = 0 : i64, scratch_operands = 0 : i64, tpu.core_type = #tpu.core_type<tc>, window_params = [{transform_indices = @transform_0, window_bounds = array<i64: 8, 32>}, {pipeline_mode = #tpu.pipeline_mode<synchronous>, transform_indices = @transform_1, window_bounds = array<i64: 40, 256>}, {pipeline_mode = #tpu.pipeline_mode<synchronous>, transform_indices = @transform_2, window_bounds = array<i64: 264, 128>}, {transform_indices = @transform_3, window_bounds = array<i64: 8, 128>}]} {
    %c0 = arith.constant 0 : index
    %c0_0 = arith.constant 0 : index
    %0 = vector.load %arg2[%c0, %c0_0] : memref<40x256xf32, #tpu.memory_space<vmem>>, vector<32x256xf32>
    %c32 = arith.constant 32 : index
    %c0_1 = arith.constant 0 : index
    %1 = vector.load %arg2[%c32, %c0_1] : memref<40x256xf32, #tpu.memory_space<vmem>>, vector<1x256xf32>
    %c0_2 = arith.constant 0 : index
    %c0_3 = arith.constant 0 : index
    %2 = vector.load %arg1[%c0_2, %c0_3] : memref<8x32xf32, #tpu.memory_space<vmem>>, vector<8x32xf32>
    %cst = arith.constant dense<0.000000e+00> : vector<8x256xf32>
    %3 = tpu.matmul %2, %0, %cst {dimension_numbers = #tpu.dot_dimension_numbers<[1], [0], [0], [1], [0, 0, 1, 1], [], []>} : vector<8x32xf32>, vector<32x256xf32>, vector<8x256xf32> -> vector<8x256xf32>
    %4 = vector.broadcast %1 : vector<1x256xf32> to vector<8x256xf32>
    %5 = arith.addf %3, %4 : vector<8x256xf32>
    %cst_4 = arith.constant 0.000000e+00 : f32
    %6 = vector.broadcast %cst_4 : f32 to vector<8x256xf32>
    %7 = arith.maximumf %5, %6 : vector<8x256xf32>
    %c0_5 = arith.constant 0 : index
    %c0_6 = arith.constant 0 : index
    %8 = vector.load %arg3[%c0_5, %c0_6] : memref<264x128xf32, #tpu.memory_space<vmem>>, vector<256x128xf32>
    %c256 = arith.constant 256 : index
    %c0_7 = arith.constant 0 : index
    %9 = vector.load %arg3[%c256, %c0_7] : memref<264x128xf32, #tpu.memory_space<vmem>>, vector<1x128xf32>
    %cst_8 = arith.constant dense<0.000000e+00> : vector<8x128xf32>
    %10 = tpu.matmul %7, %8, %cst_8 {dimension_numbers = #tpu.dot_dimension_numbers<[1], [0], [0], [1], [0, 0, 1, 1], [], []>} : vector<8x256xf32>, vector<256x128xf32>, vector<8x128xf32> -> vector<8x128xf32>
    %11 = vector.broadcast %9 : vector<1x128xf32> to vector<8x128xf32>
    %12 = arith.addf %10, %11 : vector<8x128xf32>
    %cst_9 = arith.constant dense<0xFF800000> : vector<8xf32>
    %13 = vector.multi_reduction <maximumf>, %12, %cst_9 [1] : vector<8x128xf32> to vector<8xf32>
    %14 = vector.shape_cast %13 : vector<8xf32> to vector<8x1xf32>
    %15 = vector.broadcast %14 : vector<8x1xf32> to vector<8x128xf32>
    %16 = arith.subf %12, %15 : vector<8x128xf32>
    %17 = math.exp %16 : vector<8x128xf32>
    %cst_10 = arith.constant dense<0.000000e+00> : vector<8xf32>
    %18 = vector.multi_reduction <add>, %17, %cst_10 [1] : vector<8x128xf32> to vector<8xf32>
    %19 = vector.shape_cast %18 : vector<8xf32> to vector<8x1xf32>
    %20 = vector.broadcast %19 : vector<8x1xf32> to vector<8x128xf32>
    %21 = arith.divf %17, %20 : vector<8x128xf32>
    %c0_11 = arith.constant 0 : index
    %c0_12 = arith.constant 0 : index
    %22 = vector.load %arg4[%c0_11, %c0_12] : memref<8x128xf32, #tpu.memory_space<vmem>>, vector<8x128xf32>
    tpu.vector_store %arg4[%c0_11, %c0_12], %21 {strides = array<i32>} : memref<8x128xf32, #tpu.memory_space<vmem>>, vector<8x128xf32>,
    return
  }
  func.func @transform_0(%arg0: i32) -> (i32, i32) {
    %c0_i32 = arith.constant 0 : i32
    %c0_i32_0 = arith.constant 0 : i32
    return %arg0, %c0_i32 : i32, i32
  }
  func.func @transform_1(%arg0: i32) -> (i32, i32) {
    %c0_i32 = arith.constant 0 : i32
    %c0_i32_0 = arith.constant 0 : i32
    %c0_i32_1 = arith.constant 0 : i32
    return %c0_i32, %c0_i32_0 : i32, i32
  }
  func.func @transform_2(%arg0: i32) -> (i32, i32) {
    %c0_i32 = arith.constant 0 : i32
    %c0_i32_0 = arith.constant 0 : i32
    %c0_i32_1 = arith.constant 0 : i32
    return %c0_i32, %c0_i32_0 : i32, i32
  }
  func.func @transform_3(%arg0: i32) -> (i32, i32) {
    %c0_i32 = arith.constant 0 : i32
    %c0_i32_0 = arith.constant 0 : i32
    return %arg0, %c0_i32 : i32, i32
  }
}

</mosaic_0001>

<llo_original>
// kernel: tpu_custom_call.1
$region0: #{tpu_custom_call.1}
  #allocation0 [shape = 'u32[]', space=smem, size = 0x4, offset = 0x4, fixed_abs, tag = 'smem constant byte address 0x4 - core index']
  #allocation1 [shape = 'u32[144,128]{1,0:T(1,128)}', space=vmem, size = 0x12000, scoped, tag = 'internal scratch']
  %s0 = inlined_call_operand.hbm [shape: f32[8,32], index: 0, kind: input, shape index: {}]
  %s1 = inlined_call_operand.hbm [shape: f32[40,256], index: 1, kind: input, shape index: {}]
  %s2 = inlined_call_operand.hbm [shape: f32[264,128], index: 2, kind: input, shape index: {}]
  %s3 = inlined_call_operand.hbm [shape: f32[8,128], index: 3, kind: output, shape index: {}]
  %s4 = sld [smem:[#allocation0]]
  $region34: #{tpu_custom_call.1} parent=0
    _
  %s6 = ssub.s32 1, %s4
  %s7 = scalar_select 0, %s6, %s4
  $region1: #{tpu_custom_call.1} parent=0
    #allocation2 [shape = 'u8[4096]{0}', space=vmem, size = 0x1000, scoped, tag = 'input window, operand 0, single buffered']
    #allocation3 [shape = 's32[1]{0}', space=sflag, size = 0x4, scoped, tag = 'scoped memory for tpu_custom_call.1']
    #allocation4 [shape = 's32[1]{0}', space=sflag, size = 0x4, scoped, tag = 'scoped memory for tpu_custom_call.1']
    #allocation5 [shape = 'u8[40960]{0}', space=vmem, size = 0xa000, scoped, tag = 'input window, operand 1, single buffered']
    #allocation6 [shape = 's32[1]{0}', space=sflag, size = 0x4, scoped, tag = 'scoped memory for tpu_custom_call.1']
    #allocation7 [shape = 'u8[135168]{0}', space=vmem, size = 0x21000, scoped, tag = 'input window, operand 2, single buffered']
    #allocation8 [shape = 'u8[4096]{0}', space=vmem, size = 0x1000, scoped, tag = 'output window, operand 0, single buffered']
    %8 = vsyncpa [#allocation3], 0
    %9 = vsyncpa [#allocation6], 0
    %10 = vsyncpa [#allocation4], 0
    // Predicated region
    $region2: #{tpu_custom_call.1} parent=1 // pred_check
      _
    $region3: #{tpu_custom_call.1} parent=1 // pred_check_branch
      %12 = sbr.rel (0) target = $region5
    $region4: #{tpu_custom_call.1} parent=1 // pred_region
      %s14 = ssub.s32 128, 128
      %15 = vsyncadd [#allocation3], %s14
      %s17 = sshll.u32 [#allocation2], 4
      %s18 = int_to_ptr.vmem [resolvable:$true] %s17
      %20 = dma.hbm_to_vmem [thread:$0]  %s0, 128, %s18, [#allocation3]
    $region5: #{tpu_custom_call.1} parent=1 // pred_fallthru
      _
    // Predicated region
    $region6: #{tpu_custom_call.1} parent=1 // pred_check
      _
    $region7: #{tpu_custom_call.1} parent=1 // pred_check_branch
      %22 = sbr.rel (0) target = $region9
    $region8: #{tpu_custom_call.1} parent=1 // pred_region
      %s24 = ssub.s32 1280, 1280
      %25 = vsyncadd [#allocation6], %s24
      %s26 = sshll.u32 [#allocation5], 4
      %s27 = int_to_ptr.vmem [resolvable:$true] %s26
      %32 = dma.hbm_to_vmem [thread:$0]  %s1, 1280, %s27, [#allocation6], 256, 256, 16
    $region9: #{tpu_custom_call.1} parent=1 // pred_fallthru
      _
    // Predicated region
    $region10: #{tpu_custom_call.1} parent=1 // pred_check
      _
    $region11: #{tpu_custom_call.1} parent=1 // pred_check_branch
      %34 = sbr.rel (0) target = $region13
    $region12: #{tpu_custom_call.1} parent=1 // pred_region
      %s36 = ssub.s32 4224, 4224
      %37 = vsyncadd [#allocation6], %s36
      %s38 = sshll.u32 [#allocation7], 4
      %s39 = int_to_ptr.vmem [resolvable:$true] %s38
      %44 = dma.hbm_to_vmem [thread:$0]  %s2, 4224, %s39, [#allocation6], 128, 128, 8
    $region13: #{tpu_custom_call.1} parent=1 // pred_fallthru
      _
    // Predicated region
    $region14: #{tpu_custom_call.1} parent=1 // pred_check
      _
    $region15: #{tpu_custom_call.1} parent=1 // pred_check_branch
      %46 = sbr.rel (0) target = $region17
    $region16: #{tpu_custom_call.1} parent=1 // pred_region
      %47 = dma.done [#allocation3], 128
    $region17: #{tpu_custom_call.1} parent=1 // pred_fallthru
      _
    // Predicated region
    $region18: #{tpu_custom_call.1} parent=1 // pred_check
      _
    $region19: #{tpu_custom_call.1} parent=1 // pred_check_branch
      %49 = sbr.rel (0) target = $region21
    $region20: #{tpu_custom_call.1} parent=1 // pred_region
      %50 = dma.done [#allocation6], 1280
    $region21: #{tpu_custom_call.1} parent=1 // pred_fallthru
      _
    // Predicated region
    $region22: #{tpu_custom_call.1} parent=1 // pred_check
      _
    $region23: #{tpu_custom_call.1} parent=1 // pred_check_branch
      %52 = sbr.rel (0) target = $region25
    $region24: #{tpu_custom_call.1} parent=1 // pred_region
      %53 = dma.done [#allocation6], 4224
    $region25: #{tpu_custom_call.1} parent=1 // pred_fallthru
      _
    %v54 = vld [vmem:[#allocation5] sm:$0xff]
    %v55 = vld [vmem:[#allocation5 + $0x8] sm:$0xff]
    %v56 = vld [vmem:[#allocation5 + $0x10] sm:$0xff]
    %v57 = vld [vmem:[#allocation5 + $0x18] sm:$0xff]
    %v58 = vld [vmem:[#allocation5 + $0x20] sm:$0xff]
    %v59 = vld [vmem:[#allocation5 + $0x28] sm:$0xff]
    %v60 = vld [vmem:[#allocation5 + $0x30] sm:$0xff]
    %v61 = vld [vmem:[#allocation5 + $0x38] sm:$0xff]
    %s62 = scalar_lea.vmem [#allocation5], 64
    %v63 = vld [vmem:[%s62] ss:$8 sm:$0x3]
    %v64 = vld [vmem:[#allocation2] sm:$0xff]
    %v66 = vlaneseq
    %v67 = vshrl.u32 %v66, 7
    %v68 = vsub.s32 0, %v67
    %v69 = vrot.slane %v63, %v68
    %v70 = vlaneseq
    %v71 = vshrl.u32 %v70, 7
    %v72 = vsub.s32 1, %v71
    %v73 = vrot.slane %v63, %v72
    %vm76 = vcmask 261120
    %v78 = vsel %vm76, %v64, 0
    %80 = vmatprep.subr.mxu0 %v55
    %81 = vmatpush1.msra.mxu0 %v54
    %82 = vmatprep.subr.mxu0 %v57
    %83 = vmatpush1.msra.mxu0 %v56
    %84 = vmatprep.subr.mxu0 %v59
    %85 = vmatpush1.msra.mxu0 %v58
    %86 = vmatprep.subr.mxu0 %v61
    %87 = vmatpush1.msra.mxu0 %v60
    %88 = vmatprep.subr.mxu0 0.0
    %89 = vmatpush1.msra.mxu0 0.0
    %90 = vmatprep.subr.mxu0 0.0
    %91 = vmatpush1.msra.mxu0 0.0
    %92 = vmatprep.subr.mxu0 0.0
    %93 = vmatpush1.msra.mxu0 0.0
    %94 = vmatprep.subr.mxu0 0.0
    %95 = vmatpush1.msra.mxu0 0.0
    %96 = vmatprep.subr.mxu0 0.0
    %97 = vmatpush1.msra.mxu0 0.0
    %98 = vmatprep.subr.mxu0 0.0
    %99 = vmatpush1.msra.mxu0 0.0
    %100 = vmatprep.subr.mxu0 0.0
    %101 = vmatpush1.msra.mxu0 0.0
    %102 = vmatprep.subr.mxu0 0.0
    %103 = vmatpush1.msra.mxu0 0.0
    %104 = vmatprep.subr.mxu0 0.0
    %105 = vmatpush1.msra.mxu0 0.0
    %106 = vmatprep.subr.mxu0 0.0
    %107 = vmatpush1.msra.mxu0 0.0
    %108 = vmatprep.subr.mxu0 0.0
    %109 = vmatpush1.msra.mxu0 0.0
    %110 = vmatprep.subr.mxu0 0.0
    %111 = vmatpush1.msra.mxu0 0.0
    %112 = vmatprep.subr.mxu0 0.0
    %113 = vmatpush1.msra.mxu0 0.0
    %114 = vmatprep.subr.mxu0 0.0
    %115 = vmatpush1.msra.mxu0 0.0
    %116 = vmatprep.subr.mxu0 0.0
    %117 = vmatpush1.msra.mxu0 0.0
    %118 = vmatprep.subr.mxu0 0.0
    %119 = vmatpush1.msra.mxu0 0.0
    %120 = vmatprep.subr.mxu0 0.0
    %121 = vmatpush1.msra.mxu0 0.0
    %122 = vmatprep.subr.mxu0 0.0
    %123 = vmatpush1.msra.mxu0 0.0
    %124 = vmatprep.subr.mxu0 0.0
    %125 = vmatpush1.msra.mxu0 0.0
    %126 = vmatprep.subr.mxu0 0.0
    %127 = vmatpush1.msra.mxu0 0.0
    %128 = vmatprep.subr.mxu0 0.0
    %129 = vmatpush1.msra.mxu0 0.0
    %130 = vmatprep.subr.mxu0 0.0
    %131 = vmatpush1.msra.mxu0 0.0
    %132 = vmatprep.subr.mxu0 0.0
    %133 = vmatpush1.msra.mxu0 0.0
    %134 = vmatprep.subr.mxu0 0.0
    %135 = vmatpush1.msra.mxu0 0.0
    %136 = vmatprep.subr.mxu0 0.0
    %137 = vmatpush1.msra.mxu0 0.0
    %138 = vmatprep.subr.mxu0 0.0
    %139 = vmatpush1.msra.mxu0 0.0
    %140 = vmatprep.subr.mxu0 0.0
    %141 = vmatpush1.msra.mxu0 0.0
    %142 = vmatprep.subr.mxu0 0.0
    %143 = vmatpush1.msra.mxu0 0.0
    %144 = vmatprep.mubr.f32.mxu0 0.0
    %145 = vmatmul.mubr.f32.gmra.mrb[0].mxu0 %v78
    %v146 = vpop.f32.mrb[0].mxu0
    %v147 = vadd.f32 %v69, %v146
    %v148 = vpop.f32.mrb[0].mxu0
    %v149 = vadd.f32 %v73, %v148
    %150 = vdwg.mxu0
    %v151 = vmax.f32 %v147, 0.0
    %v152 = vmax.f32 %v149, 0.0
    %v153 = vld [vmem:[#allocation7] sm:$0xff]
    %v154 = vld [vmem:[#allocation7 + $0x8] sm:$0xff]
    %v155 = vld [vmem:[#allocation7 + $0x10] sm:$0xff]
    %v156 = vld [vmem:[#allocation7 + $0x18] sm:$0xff]
    %v157 = vld [vmem:[#allocation7 + $0x20] sm:$0xff]
    %v158 = vld [vmem:[#allocation7 + $0x28] sm:$0xff]
    %v159 = vld [vmem:[#allocation7 + $0x30] sm:$0xff]
    %v160 = vld [vmem:[#allocation7 + $0x38] sm:$0xff]
    %v161 = vld [vmem:[#allocation7 + $0x40] sm:$0xff]
    %v162 = vld [vmem:[#allocation7 + $0x48] sm:$0xff]
    %v163 = vld [vmem:[#allocation7 + $0x50] sm:$0xff]
    %v164 = vld [vmem:[#allocation7 + $0x58] sm:$0xff]
    %v165 = vld [vmem:[#allocation7 + $0x60] sm:$0xff]
    %v166 = vld [vmem:[#allocation7 + $0x68] sm:$0xff]
    %v167 = vld [vmem:[#allocation7 + $0x70] sm:$0xff]
    %v168 = vld [vmem:[#allocation7 + $0x78] sm:$0xff]
    %v169 = vld [vmem:[#allocation7 + $0x80] sm:$0xff]
    %v170 = vld [vmem:[#allocation7 + $0x88] sm:$0xff]
    %v171 = vld [vmem:[#allocation7 + $0x90] sm:$0xff]
    %v172 = vld [vmem:[#allocation7 + $0x98] sm:$0xff]
    %v173 = vld [vmem:[#allocation7 + $0xa0] sm:$0xff]
    %v174 = vld [vmem:[#allocation7 + $0xa8] sm:$0xff]
    %v175 = vld [vmem:[#allocation7 + $0xb0] sm:$0xff]
    %v176 = vld [vmem:[#allocation7 + $0xb8] sm:$0xff]
    %v177 = vld [vmem:[#allocation7 + $0xc0] sm:$0xff]
    %v178 = vld [vmem:[#allocation7 + $0xc8] sm:$0xff]
    %v179 = vld [vmem:[#allocation7 + $0xd0] sm:$0xff]
    %v180 = vld [vmem:[#allocation7 + $0xd8] sm:$0xff]
    %v181 = vld [vmem:[#allocation7 + $0xe0] sm:$0xff]
    %v182 = vld [vmem:[#allocation7 + $0xe8] sm:$0xff]
    %v183 = vld [vmem:[#allocation7 + $0xf0] sm:$0xff]
    %v184 = vld [vmem:[#allocation7 + $0xf8] sm:$0xff]
    %v185 = vld [vmem:[#allocation7 + $0x100] sm:$0x1]
    %v186 = vlaneseq
    %v187 = vshrl.u32 %v186, 7
    %v188 = vsub.s32 0, %v187
    %v189 = vrot.slane %v185, %v188
    %190 = vmatprep.subr.mxu0 0.0
    %191 = vmatpush1.msra.mxu0 %v153
    %192 = vmatprep.subr.mxu0 0.0
    %193 = vmatpush1.msra.mxu0 %v154
    %194 = vmatprep.subr.mxu0 0.0
    %195 = vmatpush1.msra.mxu0 %v155
    %196 = vmatprep.subr.mxu0 0.0
    %197 = vmatpush1.msra.mxu0 %v156
    %198 = vmatprep.subr.mxu0 0.0
    %199 = vmatpush1.msra.mxu0 %v157
    %200 = vmatprep.subr.mxu0 0.0
    %201 = vmatpush1.msra.mxu0 %v158
    %202 = vmatprep.subr.mxu0 0.0
    %203 = vmatpush1.msra.mxu0 %v159
    %204 = vmatprep.subr.mxu0 0.0
    %205 = vmatpush1.msra.mxu0 %v160
    %206 = vmatprep.subr.mxu0 0.0
    %207 = vmatpush1.msra.mxu0 %v161
    %208 = vmatprep.subr.mxu0 0.0
    %209 = vmatpush1.msra.mxu0 %v162
    %210 = vmatprep.subr.mxu0 0.0
    %211 = vmatpush1.msra.mxu0 %v163
    %212 = vmatprep.subr.mxu0 0.0
    %213 = vmatpush1.msra.mxu0 %v164
    %214 = vmatprep.subr.mxu0 0.0
    %215 = vmatpush1.msra.mxu0 %v165
    %216 = vmatprep.subr.mxu0 0.0
    %217 = vmatpush1.msra.mxu0 %v166
    %218 = vmatprep.subr.mxu0 0.0
    %219 = vmatpush1.msra.mxu0 %v167
    %220 = vmatprep.subr.mxu0 0.0
    %221 = vmatpush1.msra.mxu0 %v168
    %222 = vmatprep.subr.mxu0 0.0
    %223 = vmatpush1.msra.mxu0 %v169
    %224 = vmatprep.subr.mxu0 0.0
    %225 = vmatpush1.msra.mxu0 %v170
    %226 = vmatprep.subr.mxu0 0.0
    %227 = vmatpush1.msra.mxu0 %v171
    %228 = vmatprep.subr.mxu0 0.0
    %229 = vmatpush1.msra.mxu0 %v172
    %230 = vmatprep.subr.mxu0 0.0
    %231 = vmatpush1.msra.mxu0 %v173
    %232 = vmatprep.subr.mxu0 0.0
    %233 = vmatpush1.msra.mxu0 %v174
    %234 = vmatprep.subr.mxu0 0.0
    %235 = vmatpush1.msra.mxu0 %v175
    %236 = vmatprep.subr.mxu0 0.0
    %237 = vmatpush1.msra.mxu0 %v176
    %238 = vmatprep.subr.mxu0 0.0
    %239 = vmatpush1.msra.mxu0 %v177
    %240 = vmatprep.subr.mxu0 0.0
    %241 = vmatpush1.msra.mxu0 %v178
    %242 = vmatprep.subr.mxu0 0.0
    %243 = vmatpush1.msra.mxu0 %v179
    %244 = vmatprep.subr.mxu0 0.0
    %245 = vmatpush1.msra.mxu0 %v180
    %246 = vmatprep.subr.mxu0 0.0
    %247 = vmatpush1.msra.mxu0 %v181
    %248 = vmatprep.subr.mxu0 0.0
    %249 = vmatpush1.msra.mxu0 %v182
    %250 = vmatprep.subr.mxu0 0.0
    %251 = vmatpush1.msra.mxu0 %v183
    %252 = vmatprep.subr.mxu0 0.0
    %253 = vmatpush1.msra.mxu0 %v184
    %254 = vmatprep.mubr.f32.mxu0 %v152
    %255 = vmatmul.mubr.f32.gmra.mrb[0].mxu0 %v151
    %v256 = vpop.f32.mrb[0].mxu0
    %v257 = vadd.f32 %v189, %v256
    %v258 = vpop.f32.mrb[0].mxu0
    %259 = vdwg.mxu0
    %260 = vmax.xlane.f32.xlu0 %v257
    %v261 = vpop.xlane.xlu0 %260
    %v262 = vsub.f32 %v257, %v261
    %v263 = vmul.f32 %v262, 1.442695
    %v264 = vpow.pop %v263
    %265 = vadd.xlane.f32.xlu0 %v264
    %v266 = vpop.xlane.xlu0 %265
    %v267 = vrcp.pop %v266
    %v268 = vmul.f32 %v264, %v267
    %269 = vst [vmem:[#allocation8] sm:$0xff] %v268
    // Predicated region
    $region26: #{tpu_custom_call.1} parent=1 // pred_check
      _
    $region27: #{tpu_custom_call.1} parent=1 // pred_check_branch
      %271 = sbr.rel (0) target = $region29
    $region28: #{tpu_custom_call.1} parent=1 // pred_region
      %s273 = ssub.s32 128, 128
      %274 = vsyncadd [#allocation4], %s273
      %s276 = sshll.u32 [#allocation8], 4
      %s277 = int_to_ptr.vmem [resolvable:$true] %s276
      %279 = dma.vmem_to_hbm [thread:$0]  %s277, 128, %s3, [#allocation4]
    $region29: #{tpu_custom_call.1} parent=1 // pred_fallthru
      _
    // Predicated region
    $region30: #{tpu_custom_call.1} parent=1 // pred_check
      _
    $region31: #{tpu_custom_call.1} parent=1 // pred_check_branch
      %281 = sbr.rel (0) target = $region33
    $region32: #{tpu_custom_call.1} parent=1 // pred_region
      %282 = dma.done [#allocation4], 128
    $region33: #{tpu_custom_call.1} parent=1 // pred_fallthru
      _
    %283 = vsyncpa [#allocation3], 1
    %284 = vsyncpa [#allocation6], 1
    %285 = vsyncpa [#allocation4], 1

</llo_original>
